<compile_context>
chip_gen: v5e
topology: v5e:2x2
jax: 0.10.0
libtpu: 0.0.40
codegen_flags: <defaults>
</compile_context>

<pallas_src>
import jax
import jax.numpy as jnp
from jax.experimental import pallas as pl
from jax.experimental.pallas import tpu as pltpu


def _round_up(n, m):
    return ((n + m - 1) // m) * m


def _default_min_grid_steps():
    """2 grid steps only on v7x (2 TensorCores/chip); 1 elsewhere (v5e/v6e/CPU)."""
    try:
        kind = jax.devices()[0].device_kind.lower()
    except Exception:
        return 1
    return 2 if "v7" in kind else 1


def mlp_kernel(x_ref, w1_ref, b1_ref, w2_ref, b2_ref, w3_ref, b3_ref, o_ref):
    """Fused 3-layer MLP, batch-on-lanes layout.

    x_ref : (4, TB)   feature-major input tile (batch on the lane axis)
    wN_ref: (out, in) PyTorch-native weight layout
    bN_ref: (out, 1)  column bias, broadcast along lanes
    o_ref : (3, TB)   lane-dense softmax probabilities
    """
    x = x_ref[...]                                                      # (4, TB) f32

    # Layer 1: (16,4) @ (4,TB) + (16,1) -> ReLU
    h1 = jnp.dot(w1_ref[...], x, preferred_element_type=jnp.float32) + b1_ref[...]
    h1 = jnp.maximum(h1, 0.0)

    # Layer 2: (16,16) @ (16,TB) + (16,1) -> ReLU
    h2 = jnp.dot(w2_ref[...], h1, preferred_element_type=jnp.float32) + b2_ref[...]
    h2 = jnp.maximum(h2, 0.0)

    # Layer 3: (3,16) @ (16,TB) + (3,1) -> softmax over the 3-class (sublane) axis
    logits = jnp.dot(w3_ref[...], h2, preferred_element_type=jnp.float32) + b3_ref[...]
    m = jnp.max(logits, axis=0, keepdims=True)                          # (1, TB)
    e = jnp.exp(logits - m)
    denom = jnp.sum(e, axis=0, keepdims=True)
    # Exact divide: kernel is HBM/overhead-bound, so the exact reciprocal is
    # free and rows sum to 1 at f32 precision (no approx-recip relaxation).
    o_ref[...] = e / denom


def simple_mlp_forward(x, params, *, batch_tile=8192, min_grid_steps=None):
    """x: (B, 4) float32. Returns (B, 3) float32 softmax probabilities."""
    w1, b1, w2, b2, w3, b3 = params
    B = x.shape[0]

    if min_grid_steps is None:
        min_grid_steps = _default_min_grid_steps()

    # Clamp the tile for small batches (don't pad B=8 out to batch_tile rows),
    # then round to the 128-lane granule.
    eff_tile = min(batch_tile, _round_up(B, 128))
    eff_tile = _round_up(eff_tile, 128)

    n_steps = max(pl.cdiv(B, eff_tile), min_grid_steps)
    # v7x: keep the step count even so the "parallel" axis splits across both TCs.
    if min_grid_steps >= 2 and (n_steps % 2):
        n_steps += 1
    padded_B = n_steps * eff_tile

    # Single small pad+transpose pass: feature-major (4, padded_B), batch on lanes.
    x_t = jnp.pad(x.T.astype(jnp.float32), ((0, 0), (0, padded_B - B)))

    # Weights/biases are tiny (<2 KiB total) and stay VMEM-resident every step.
    full = lambda a: pl.BlockSpec(a.shape, lambda i: (0, 0))

    out_t = pl.pallas_call(
        mlp_kernel,
        out_shape=jax.ShapeDtypeStruct((3, padded_B), jnp.float32),
        grid_spec=pltpu.PrefetchScalarGridSpec(
            num_scalar_prefetch=0,
            grid=(n_steps,),
            in_specs=[
                pl.BlockSpec((4, eff_tile), lambda i: (0, i)),   # x tile (batch on lanes)
                full(w1), full(b1),
                full(w2), full(b2),
                full(w3), full(b3),
            ],
            out_specs=pl.BlockSpec((3, eff_tile), lambda i: (0, i)),  # lane-dense out
        ),
        compiler_params=pltpu.CompilerParams(
            dimension_semantics=("parallel",)),
    )(x_t, w1, b1, w2, b2, w3, b3)

    # Slice the real batch columns FIRST, then transpose back to PyTorch layout.
    return out_t[:, :B].T


def init_params(key):
    """Deterministic init mimicking nn.Linear (uniform +/- 1/sqrt(fan_in)).

    Weights are stored PyTorch-style (out_features, in_features);
    biases as (out_features, 1) columns for lane-broadcast in the kernel.
    """
    def linear(key, fan_in, fan_out):
        kw, kb = jax.random.split(key)
        bound = 1.0 / jnp.sqrt(fan_in)
        w = jax.random.uniform(kw, (fan_out, fan_in), jnp.float32, -bound, bound)
        b = jax.random.uniform(kb, (fan_out, 1), jnp.float32, -bound, bound)
        return w, b

    k1, k2, k3 = jax.random.split(key, 3)
    w1, b1 = linear(k1, 4, 16)
    w2, b2 = linear(k2, 16, 16)
    w3, b3 = linear(k3, 16, 3)
    return (w1, b1, w2, b2, w3, b3)


def reference_forward(x, params):
    """Pure-JAX reference (row-major, PyTorch semantics) for correctness."""
    w1, b1, w2, b2, w3, b3 = params
    h1 = jnp.maximum(x @ w1.T + b1[:, 0], 0.0)
    h2 = jnp.maximum(h1 @ w2.T + b2[:, 0], 0.0)
    return jax.nn.softmax(h2 @ w3.T + b3[:, 0], axis=1)


if __name__ == "__main__":
    key = jax.random.PRNGKey(0)
    k_params, k_x = jax.random.split(key)

    params = init_params(k_params)
    x = jax.random.normal(k_x, (8, 4), dtype=jnp.float32)  # batch=8, in_features=4

    out = simple_mlp_forward(x, params)
    out = jax.block_until_ready(out)

    ref = reference_forward(x, params)
    assert out.shape == (8, 3)
    # Generous tolerance vs the pure-JAX reference (covers any matmul-precision
    # difference between the MXU path and XLA's default f32 dot).
    assert jnp.allclose(out, ref, atol=2e-3, rtol=2e-3), "mismatch vs reference"
    # Exact softmax divide: rows sum to 1 at f32 precision.
    assert jnp.allclose(jnp.sum(out, axis=1), 1.0, atol=1e-4), "softmax rows must sum to ~1"

    print("KERNEL_OK")
</pallas_src>

<mosaic_0001>
module attributes {stable_mosaic.version = 11 : i64} {
  func.func @mlp_kernel(%arg0: i32, %arg1: memref<4x128xf32, #tpu.memory_space<vmem>>, %arg2: memref<16x4xf32, #tpu.memory_space<vmem>>, %arg3: memref<16x1xf32, #tpu.memory_space<vmem>>, %arg4: memref<16x16xf32, #tpu.memory_space<vmem>>, %arg5: memref<16x1xf32, #tpu.memory_space<vmem>>, %arg6: memref<3x16xf32, #tpu.memory_space<vmem>>, %arg7: memref<3x1xf32, #tpu.memory_space<vmem>>, %arg8: memref<3x128xf32, #tpu.memory_space<vmem>>) attributes {dimension_semantics = [#tpu.dimension_semantics<parallel>], iteration_bounds = array<i64: 1>, scalar_prefetch = 0 : i64, scratch_operands = 0 : i64, tpu.core_type = #tpu.core_type<tc>, window_params = [{transform_indices = @transform_0, window_bounds = array<i64: 4, 128>}, {pipeline_mode = #tpu.pipeline_mode<synchronous>, transform_indices = @transform_1, window_bounds = array<i64: 16, 4>}, {pipeline_mode = #tpu.pipeline_mode<synchronous>, transform_indices = @transform_2, window_bounds = array<i64: 16, 1>}, {pipeline_mode = #tpu.pipeline_mode<synchronous>, transform_indices = @transform_3, window_bounds = array<i64: 16, 16>}, {pipeline_mode = #tpu.pipeline_mode<synchronous>, transform_indices = @transform_4, window_bounds = array<i64: 16, 1>}, {pipeline_mode = #tpu.pipeline_mode<synchronous>, transform_indices = @transform_5, window_bounds = array<i64: 3, 16>}, {pipeline_mode = #tpu.pipeline_mode<synchronous>, transform_indices = @transform_6, window_bounds = array<i64: 3, 1>}, {transform_indices = @transform_7, window_bounds = array<i64: 3, 128>}]} {
    %c0 = arith.constant 0 : index
    %c0_0 = arith.constant 0 : index
    %0 = vector.load %arg1[%c0, %c0_0] : memref<4x128xf32, #tpu.memory_space<vmem>>, vector<4x128xf32>
    %c0_1 = arith.constant 0 : index
    %c0_2 = arith.constant 0 : index
    %1 = vector.load %arg2[%c0_1, %c0_2] : memref<16x4xf32, #tpu.memory_space<vmem>>, vector<16x4xf32>
    %cst = arith.constant dense<0.000000e+00> : vector<16x128xf32>
    %2 = tpu.matmul %1, %0, %cst {dimension_numbers = #tpu.dot_dimension_numbers<[1], [0], [0], [1], [0, 0, 1, 1], [], []>} : vector<16x4xf32>, vector<4x128xf32>, vector<16x128xf32> -> vector<16x128xf32>
    %c0_3 = arith.constant 0 : index
    %c0_4 = arith.constant 0 : index
    %3 = vector.load %arg3[%c0_3, %c0_4] : memref<16x1xf32, #tpu.memory_space<vmem>>, vector<16x1xf32>
    %4 = vector.broadcast %3 : vector<16x1xf32> to vector<16x128xf32>
    %5 = arith.addf %2, %4 : vector<16x128xf32>
    %cst_5 = arith.constant 0.000000e+00 : f32
    %6 = vector.broadcast %cst_5 : f32 to vector<16x128xf32>
    %7 = arith.maximumf %5, %6 : vector<16x128xf32>
    %c0_6 = arith.constant 0 : index
    %c0_7 = arith.constant 0 : index
    %8 = vector.load %arg4[%c0_6, %c0_7] : memref<16x16xf32, #tpu.memory_space<vmem>>, vector<16x16xf32>
    %cst_8 = arith.constant dense<0.000000e+00> : vector<16x128xf32>
    %9 = tpu.matmul %8, %7, %cst_8 {dimension_numbers = #tpu.dot_dimension_numbers<[1], [0], [0], [1], [0, 0, 1, 1], [], []>} : vector<16x16xf32>, vector<16x128xf32>, vector<16x128xf32> -> vector<16x128xf32>
    %c0_9 = arith.constant 0 : index
    %c0_10 = arith.constant 0 : index
    %10 = vector.load %arg5[%c0_9, %c0_10] : memref<16x1xf32, #tpu.memory_space<vmem>>, vector<16x1xf32>
    %11 = vector.broadcast %10 : vector<16x1xf32> to vector<16x128xf32>
    %12 = arith.addf %9, %11 : vector<16x128xf32>
    %cst_11 = arith.constant 0.000000e+00 : f32
    %13 = vector.broadcast %cst_11 : f32 to vector<16x128xf32>
    %14 = arith.maximumf %12, %13 : vector<16x128xf32>
    %c0_12 = arith.constant 0 : index
    %c0_13 = arith.constant 0 : index
    %15 = vector.load %arg6[%c0_12, %c0_13] : memref<3x16xf32, #tpu.memory_space<vmem>>, vector<3x16xf32>
    %cst_14 = arith.constant dense<0.000000e+00> : vector<3x128xf32>
    %16 = tpu.matmul %15, %14, %cst_14 {dimension_numbers = #tpu.dot_dimension_numbers<[1], [0], [0], [1], [0, 0, 1, 1], [], []>} : vector<3x16xf32>, vector<16x128xf32>, vector<3x128xf32> -> vector<3x128xf32>
    %c0_15 = arith.constant 0 : index
    %c0_16 = arith.constant 0 : index
    %17 = vector.load %arg7[%c0_15, %c0_16] : memref<3x1xf32, #tpu.memory_space<vmem>>, vector<3x1xf32>
    %18 = vector.broadcast %17 : vector<3x1xf32> to vector<3x128xf32>
    %19 = arith.addf %16, %18 : vector<3x128xf32>
    %cst_17 = arith.constant dense<0xFF800000> : vector<128xf32>
    %20 = vector.multi_reduction <maximumf>, %19, %cst_17 [0] : vector<3x128xf32> to vector<128xf32>
    %21 = vector.shape_cast %20 : vector<128xf32> to vector<1x128xf32>
    %22 = vector.broadcast %21 : vector<1x128xf32> to vector<3x128xf32>
    %23 = arith.subf %19, %22 : vector<3x128xf32>
    %24 = math.exp %23 : vector<3x128xf32>
    %cst_18 = arith.constant dense<0.000000e+00> : vector<128xf32>
    %25 = vector.multi_reduction <add>, %24, %cst_18 [0] : vector<3x128xf32> to vector<128xf32>
    %26 = vector.shape_cast %25 : vector<128xf32> to vector<1x128xf32>
    %27 = vector.broadcast %26 : vector<1x128xf32> to vector<3x128xf32>
    %28 = arith.divf %24, %27 : vector<3x128xf32>
    %c0_19 = arith.constant 0 : index
    %c0_20 = arith.constant 0 : index
    %29 = vector.load %arg8[%c0_19, %c0_20] : memref<3x128xf32, #tpu.memory_space<vmem>>, vector<3x128xf32>
    tpu.vector_store %arg8[%c0_19, %c0_20], %28 {strides = array<i32>} : memref<3x128xf32, #tpu.memory_space<vmem>>, vector<3x128xf32>,
    return
  }
  func.func @transform_0(%arg0: i32) -> (i32, i32) {
    %c0_i32 = arith.constant 0 : i32
    %c0_i32_0 = arith.constant 0 : i32
    return %c0_i32, %arg0 : i32, i32
  }
  func.func @transform_1(%arg0: i32) -> (i32, i32) {
    %c0_i32 = arith.constant 0 : i32
    %c0_i32_0 = arith.constant 0 : i32
    %c0_i32_1 = arith.constant 0 : i32
    return %c0_i32, %c0_i32_0 : i32, i32
  }
  func.func @transform_2(%arg0: i32) -> (i32, i32) {
    %c0_i32 = arith.constant 0 : i32
    %c0_i32_0 = arith.constant 0 : i32
    %c0_i32_1 = arith.constant 0 : i32
    return %c0_i32, %c0_i32_0 : i32, i32
  }
  func.func @transform_3(%arg0: i32) -> (i32, i32) {
    %c0_i32 = arith.constant 0 : i32
    %c0_i32_0 = arith.constant 0 : i32
    %c0_i32_1 = arith.constant 0 : i32
    return %c0_i32, %c0_i32_0 : i32, i32
  }
  func.func @transform_4(%arg0: i32) -> (i32, i32) {
    %c0_i32 = arith.constant 0 : i32
    %c0_i32_0 = arith.constant 0 : i32
    %c0_i32_1 = arith.constant 0 : i32
    return %c0_i32, %c0_i32_0 : i32, i32
  }
  func.func @transform_5(%arg0: i32) -> (i32, i32) {
    %c0_i32 = arith.constant 0 : i32
    %c0_i32_0 = arith.constant 0 : i32
    %c0_i32_1 = arith.constant 0 : i32
    return %c0_i32, %c0_i32_0 : i32, i32
  }
  func.func @transform_6(%arg0: i32) -> (i32, i32) {
    %c0_i32 = arith.constant 0 : i32
    %c0_i32_0 = arith.constant 0 : i32
    %c0_i32_1 = arith.constant 0 : i32
    return %c0_i32, %c0_i32_0 : i32, i32
  }
  func.func @transform_7(%arg0: i32) -> (i32, i32) {
    %c0_i32 = arith.constant 0 : i32
    %c0_i32_0 = arith.constant 0 : i32
    return %c0_i32, %arg0 : i32, i32
  }
}

</mosaic_0001>

<llo_original>
// kernel: tpu_custom_call.1
$region0: #{tpu_custom_call.1}
  #allocation0 [shape = 'u32[]', space=smem, size = 0x4, offset = 0x4, fixed_abs, tag = 'smem constant byte address 0x4 - core index']
  #allocation1 [shape = 'u32[72,128]{1,0:T(1,128)}', space=vmem, size = 0x9000, scoped, tag = 'internal scratch']
  %s0 = inlined_call_operand.vmem [shape: f32[4,128], index: 0, kind: input, shape index: {}]
  %s1 = inlined_call_operand.vmem [shape: f32[16,4], index: 1, kind: input, shape index: {}]
  %s2 = inlined_call_operand.vmem [shape: f32[16,1], index: 2, kind: input, shape index: {}]
  %s3 = inlined_call_operand.vmem [shape: f32[16,16], index: 3, kind: input, shape index: {}]
  %s4 = inlined_call_operand.vmem [shape: f32[16,1], index: 4, kind: input, shape index: {}]
  %s5 = inlined_call_operand.vmem [shape: f32[3,16], index: 5, kind: input, shape index: {}]
  %s6 = inlined_call_operand.vmem [shape: f32[3,1], index: 6, kind: input, shape index: {}]
  %s7 = inlined_call_operand.hbm [shape: f32[3,128], index: 7, kind: output, shape index: {}]
  %s8 = sld [smem:[#allocation0]]
  $region38: #{tpu_custom_call.1} parent=0
    _
  %s10 = ssub.s32 1, %s8
  %s11 = scalar_select 0, %s10, %s8
  $region1: #{tpu_custom_call.1} parent=0
    #allocation2 [shape = 'u8[2048]{0}', space=vmem, size = 0x800, scoped, tag = 'output window, operand 0, single buffered']
    #allocation3 [shape = 's32[1]{0}', space=sflag, size = 0x4, scoped, tag = 'scoped memory for tpu_custom_call.1']
    %12 = vsyncpa [#allocation3], 0
    // Predicated region
    $region2: #{tpu_custom_call.1} parent=1 // pred_check
      _
    $region3: #{tpu_custom_call.1} parent=1 // pred_check_branch
      %14 = sbr.rel (0) target = $region5
    $region4: #{tpu_custom_call.1} parent=1 // pred_region
      _
    $region5: #{tpu_custom_call.1} parent=1 // pred_fallthru
      _
    // Predicated region
    $region6: #{tpu_custom_call.1} parent=1 // pred_check
      _
    $region7: #{tpu_custom_call.1} parent=1 // pred_check_branch
      %16 = sbr.rel (0) target = $region9
    $region8: #{tpu_custom_call.1} parent=1 // pred_region
      _
    $region9: #{tpu_custom_call.1} parent=1 // pred_fallthru
      _
    // Predicated region
    $region10: #{tpu_custom_call.1} parent=1 // pred_check
      _
    $region11: #{tpu_custom_call.1} parent=1 // pred_check_branch
      %18 = sbr.rel (0) target = $region13
    $region12: #{tpu_custom_call.1} parent=1 // pred_region
      _
    $region13: #{tpu_custom_call.1} parent=1 // pred_fallthru
      _
    // Predicated region
    $region14: #{tpu_custom_call.1} parent=1 // pred_check
      _
    $region15: #{tpu_custom_call.1} parent=1 // pred_check_branch
      %20 = sbr.rel (0) target = $region17
    $region16: #{tpu_custom_call.1} parent=1 // pred_region
      _
    $region17: #{tpu_custom_call.1} parent=1 // pred_fallthru
      _
    // Predicated region
    $region18: #{tpu_custom_call.1} parent=1 // pred_check
      _
    $region19: #{tpu_custom_call.1} parent=1 // pred_check_branch
      %22 = sbr.rel (0) target = $region21
    $region20: #{tpu_custom_call.1} parent=1 // pred_region
      _
    $region21: #{tpu_custom_call.1} parent=1 // pred_fallthru
      _
    // Predicated region
    $region22: #{tpu_custom_call.1} parent=1 // pred_check
      _
    $region23: #{tpu_custom_call.1} parent=1 // pred_check_branch
      %24 = sbr.rel (0) target = $region25
    $region24: #{tpu_custom_call.1} parent=1 // pred_region
      _
    $region25: #{tpu_custom_call.1} parent=1 // pred_fallthru
      _
    // Predicated region
    $region26: #{tpu_custom_call.1} parent=1 // pred_check
      _
    $region27: #{tpu_custom_call.1} parent=1 // pred_check_branch
      %26 = sbr.rel (0) target = $region29
    $region28: #{tpu_custom_call.1} parent=1 // pred_region
      _
    $region29: #{tpu_custom_call.1} parent=1 // pred_fallthru
      _
    %v27 = vld [vmem:[%s0] sm:$0xf]
    %v28 = vld [vmem:[%s1] sm:$0xff]
    %v29 = vld [vmem:[%s1 + $0x8] sm:$0xff]
    %v30 = vld [vmem:[%s2] sm:$0xff]
    %v31 = vld [vmem:[%s2 + $0x8] sm:$0xff]
    %33 = vset.pattern.permute.xlu0 0
    %34 = vperm.xlu0 %33, %v30
    %v35 = vpop.permute.xlu0 %34
    %38 = vset.pattern.permute.xlu0 0
    %39 = vperm.xlu0 %38, %v31
    %v40 = vpop.permute.xlu0 %39
    %vm42 = vcmask 31744
    %v44 = vsel %vm42, %v28, 0
    %v47 = vsel %vm42, %v29, 0
    %vm49 = vcmask 1043456
    %v51 = vsel %vm49, %v27, 0
    %53 = vmatpush.msra.mxu0 0.0
    %54 = vmatpush.msra.mxu0 0.0
    %55 = vmatpush.msra.mxu0 0.0
    %56 = vmatpush.msra.mxu0 0.0
    %57 = vmatpush.msra.mxu0 0.0
    %58 = vmatpush.msra.mxu0 0.0
    %59 = vmatpush.msra.mxu0 0.0
    %60 = vmatpush.msra.mxu0 0.0
    %61 = vmatpush.msra.mxu0 0.0
    %62 = vmatpush.msra.mxu0 0.0
    %63 = vmatpush.msra.mxu0 0.0
    %64 = vmatpush.msra.mxu0 0.0
    %65 = vmatpush.msra.mxu0 0.0
    %66 = vmatpush.msra.mxu0 0.0
    %67 = vmatpush.msra.mxu0 0.0
    %68 = vmatpush.msra.mxu0 %v51
    %69 = vmatmul.f32.gmra.mxu0 %v44
    %v70 = vpop.f32.mrf.mxu0
    %v71 = vadd.f32 %v35, %v70
    %72 = vmatmul.f32.gmra.mxu0 %v47
    %v73 = vpop.f32.mrf.mxu0
    %v74 = vadd.f32 %v40, %v73
    %75 = vdwg.mxu0
    %v76 = vmax.f32 %v71, 0.0
    %v77 = vmax.f32 %v74, 0.0
    %v78 = vld [vmem:[%s3] sm:$0xff]
    %v79 = vld [vmem:[%s3 + $0x8] sm:$0xff]
    %v80 = vld [vmem:[%s4] sm:$0xff]
    %v81 = vld [vmem:[%s4 + $0x8] sm:$0xff]
    %83 = vset.pattern.permute.xlu0 0
    %84 = vperm.xlu0 %83, %v80
    %v85 = vpop.permute.xlu0 %84
    %88 = vset.pattern.permute.xlu0 0
    %89 = vperm.xlu0 %88, %v81
    %v90 = vpop.permute.xlu0 %89
    %vm92 = vcmask 130048
    %v94 = vsel %vm92, %v78, 0
    %v97 = vsel %vm92, %v79, 0
    %99 = vmatpush.msra.mxu0 0.0
    %100 = vmatpush.msra.mxu0 0.0
    %101 = vmatpush.msra.mxu0 0.0
    %102 = vmatpush.msra.mxu0 0.0
    %103 = vmatpush.msra.mxu0 0.0
    %104 = vmatpush.msra.mxu0 0.0
    %105 = vmatpush.msra.mxu0 0.0
    %106 = vmatpush.msra.mxu0 0.0
    %107 = vmatpush.msra.mxu0 0.0
    %108 = vmatpush.msra.mxu0 0.0
    %109 = vmatpush.msra.mxu0 0.0
    %110 = vmatpush.msra.mxu0 0.0
    %111 = vmatpush.msra.mxu0 0.0
    %112 = vmatpush.msra.mxu0 0.0
    %113 = vmatpush.msra.mxu0 %v77
    %114 = vmatpush.msra.mxu0 %v76
    %115 = vmatmul.f32.gmra.mxu0 %v94
    %v116 = vpop.f32.mrf.mxu0
    %v117 = vadd.f32 %v85, %v116
    %118 = vmatmul.f32.gmra.mxu0 %v97
    %v119 = vpop.f32.mrf.mxu0
    %v120 = vadd.f32 %v90, %v119
    %121 = vdwg.mxu0
    %v122 = vmax.f32 %v117, 0.0
    %v123 = vmax.f32 %v120, 0.0
    %v124 = vld [vmem:[%s5] sm:$0x7]
    %v125 = vld [vmem:[%s6] sm:$0x7]
    %127 = vset.pattern.permute.xlu0 0
    %128 = vperm.xlu0 %127, %v125
    %v129 = vpop.permute.xlu0 %128
    %v132 = vsel %vm92, %v124, 0
    %134 = vmatpush.msra.mxu0 0.0
    %135 = vmatpush.msra.mxu0 0.0
    %136 = vmatpush.msra.mxu0 0.0
    %137 = vmatpush.msra.mxu0 0.0
    %138 = vmatpush.msra.mxu0 0.0
    %139 = vmatpush.msra.mxu0 0.0
    %140 = vmatpush.msra.mxu0 0.0
    %141 = vmatpush.msra.mxu0 0.0
    %142 = vmatpush.msra.mxu0 0.0
    %143 = vmatpush.msra.mxu0 0.0
    %144 = vmatpush.msra.mxu0 0.0
    %145 = vmatpush.msra.mxu0 0.0
    %146 = vmatpush.msra.mxu0 0.0
    %147 = vmatpush.msra.mxu0 0.0
    %148 = vmatpush.msra.mxu0 %v123
    %149 = vmatpush.msra.mxu0 %v122
    %150 = vmatmul.f32.gmra.mxu0 %v132
    %v151 = vpop.f32.mrf.mxu0
    %v152 = vadd.f32 %v129, %v151
    %153 = vdwg.mxu0
    %vm154 = vcmask 1042432
    %v155 = vsel %vm154, %v152, -inf
    %v156 = vrot.slane %v155, 4
    %v157 = vmax.f32 %v155, %v156
    %v158 = vrot.slane %v157, 2
    %v159 = vmax.f32 %v157, %v158
    %v160 = vrot.slane %v159, 1
    %v161 = vmax.f32 %v159, %v160
    %v162 = vsub.f32 %v152, %v161
    %v163 = vmul.f32 %v162, 1.442695
    %v164 = vpow.pop %v163
    %v165 = vsel %vm154, %v164, 0.0
    %v166 = vrot.slane %v165, 4
    %v167 = vadd.f32 %v165, %v166
    %v168 = vrot.slane %v167, 2
    %v169 = vadd.f32 %v167, %v168
    %v170 = vrot.slane %v169, 1
    %v171 = vadd.f32 %v169, %v170
    %v172 = vrcp.pop %v171
    %v173 = vmul.f32 %v171, %v172
    %v174 = vsub.f32 1.0, %v173
    %v175 = vmul.f32 %v172, %v174
    %v176 = vadd.f32 %v172, %v175
    %vm177 = vweird.f32 %v171
    %vm178 = vweird.f32 %v172
    %vm179 = vmor %vm177, %vm178
    %v180 = vsel %vm179, %v172, %v176
    %v181 = vand.u32 2147483647, %v171
    %vm182 = vcmp.eq.f32.partialorder %v181, 8.507059e+37
    %v183 = vand.u32 %v171, 2147483648
    %v184 = vor.u32 1.1754944e-38, %v183
    %v185 = vsel %vm182, %v184, %v180
    %v186 = vmul.f32 %v164, %v185
    %187 = vst [vmem:[#allocation2] sm:$0x7] %v186
    // Predicated region
    $region30: #{tpu_custom_call.1} parent=1 // pred_check
      _
    $region31: #{tpu_custom_call.1} parent=1 // pred_check_branch
      %189 = sbr.rel (0) target = $region33
    $region32: #{tpu_custom_call.1} parent=1 // pred_region
      %191 = vsyncadd [#allocation3], 0
      %s193 = sshll.u32 [#allocation2], 4
      %s194 = int_to_ptr.vmem [resolvable:$true] %s193
      %s195 = sshll.u32 %s7, 4
      %s196 = int_to_ptr.hbm [resolvable:$true] %s195
      %198 = dma.vmem_to_hbm [thread:$0]  %s194, 64, %s196, [#allocation3]
    $region33: #{tpu_custom_call.1} parent=1 // pred_fallthru
      _
    // Predicated region
    $region34: #{tpu_custom_call.1} parent=1 // pred_check
      _
    $region35: #{tpu_custom_call.1} parent=1 // pred_check_branch
      %200 = sbr.rel (0) target = $region37
    $region36: #{tpu_custom_call.1} parent=1 // pred_region
      %202 = dma.done [#allocation3], 64
    $region37: #{tpu_custom_call.1} parent=1 // pred_fallthru
      _
    %203 = vsyncpa [#allocation3], 1

</llo_original>
